<compile_context>
chip_gen: v7x
topology: tpu7x:2x2x1
jax: 0.10.0
libtpu: 0.0.40
codegen_flags: <defaults>
</compile_context>

<pallas_src>
from functools import partial

import numpy as np
import jax
import jax.numpy as jnp
from jax.experimental import pallas as pl
from jax.experimental.pallas import tpu as pltpu


def _fnn1_kernel(xt_ref, w1t_ref, b1_ref, w4t_ref, b4_ref, ot_ref):
    # xt_ref : (D_in,  TN)   batch on lanes
    # w1t_ref: (H,     D_in) scale already folded in
    # b1_ref : (H,     1)
    # w4t_ref: (D_out, H)
    # b4_ref : (D_out, 1)
    # ot_ref : (D_out, TN)
    xt = xt_ref[...].astype(jnp.float32)

    # Layer 1: h^T = W1s^T @ x^T -> (H, TN).  K = D_in = 4 (MXU under-utilized
    # but never the binding unit at these shapes).
    h = jnp.dot(w1t_ref[...], xt, preferred_element_type=jnp.float32)
    h = h + b1_ref[...]                 # (H, 1) bias broadcast once over lanes
    y1 = jnp.tanh(h)                    # EUP tanh on a lane-dense tile

    # Layer 2: y^T = W4s^T @ y1^T -> (D_out, TN).  K = H = 32 on the MXU.
    y = jnp.dot(w4t_ref[...], y1, preferred_element_type=jnp.float32)
    ot_ref[...] = (y + b4_ref[...]).astype(ot_ref.dtype)


@partial(jax.jit, static_argnames=("tile_n",))
def fnn1_forward(x, w1, b1, w4, b4, a1, *, tile_n=16384):
    """FNN1 forward.

    x : (N, D_in);  w1 : (D_in, H);  b1 : (H,);
    w4 : (H, D_out);  b4 : (D_out,);  a1 : scalar.
    Returns (N, D_out) in x.dtype.
    """
    N, D_in = x.shape
    H = w1.shape[1]
    D_out = w4.shape[1]

    # n * a1 with n = 1/a1, computed in f32 exactly like the module (== 1.0).
    a1f = jnp.asarray(a1, jnp.float32)
    scale = (jnp.float32(1.0) / a1f) * a1f
    # Fold the (identity) scale into the weights/biases; transpose for the
    # batch-on-lanes kernel layout.  All tiny; constant-folded under jit.
    w1t = (w1.astype(jnp.float32) * scale).T          # (H, D_in)
    b1c = (b1.astype(jnp.float32) * scale)[:, None]   # (H, 1)
    w4t = (w4.astype(jnp.float32) * scale).T          # (D_out, H)
    b4c = (b4.astype(jnp.float32) * scale)[:, None]   # (D_out, 1)

    # --- Batch tiling: lanes want multiples of 128; `tile_n` is sweepable. ---
    lane = 128
    n_up = pl.cdiv(N, lane) * lane                    # minimum padded batch
    tn = max(lane, (min(tile_n, n_up) // lane) * lane)  # 128-multiple tile
    n_tiles = pl.cdiv(n_up, tn)
    if n_tiles == 1 and tn >= 2 * lane and tn % (2 * lane) == 0:
        # Split a lone tile in two so both v7x TensorCores get work.
        tn //= 2
        n_tiles = 2
    elif n_tiles > 1 and n_tiles % 2:
        # Even grid -> both v7x TensorCores get equal work.
        n_tiles += 1
    n_pad = n_tiles * tn
    assert tn % lane == 0 and n_pad % tn == 0 and n_pad >= N

    # Batch-on-lanes layout + zero padding of the tail tile (sliced off below).
    # Under jit the pad fuses into the transpose copy (single extra HBM pass).
    xt = jnp.pad(x.T, ((0, 0), (0, n_pad - N)))       # (D_in, n_pad)

    grid = (n_tiles,)

    # Advisory cost of the whole call for XLA's scheduler.
    cost = pl.CostEstimate(
        flops=2 * n_pad * (D_in * H + H * D_out),
        transcendentals=n_pad * H,
        bytes_accessed=4 * (n_pad * (D_in + D_out) + H * (D_in + D_out + 1) + D_out),
    )

    yt = pl.pallas_call(
        _fnn1_kernel,
        out_shape=jax.ShapeDtypeStruct((D_out, n_pad), x.dtype),
        grid_spec=pltpu.PrefetchScalarGridSpec(
            num_scalar_prefetch=0,
            grid=grid,
            in_specs=[
                pl.BlockSpec((D_in, tn), lambda i: (0, i)),    # x^T tile (pipelined)
                pl.BlockSpec((H, D_in), lambda i: (0, 0)),     # W1^T (VMEM-resident)
                pl.BlockSpec((H, 1), lambda i: (0, 0)),        # b1
                pl.BlockSpec((D_out, H), lambda i: (0, 0)),    # W4^T (VMEM-resident)
                pl.BlockSpec((D_out, 1), lambda i: (0, 0)),    # b4
            ],
            out_specs=pl.BlockSpec((D_out, tn), lambda i: (0, i)),  # y^T tile
        ),
        compiler_params=pltpu.CompilerParams(
            dimension_semantics=("parallel",),       # batch tiles independent
            vmem_limit_bytes=32 * 1024 * 1024,
        ),
        cost_estimate=cost,
    )(xt, w1t, b1c, w4t, b4c)

    return yt[:, :N].T                               # back to (N, D_out)


def init_params(key, D_in, H, D_out):
    """Mirror FNN1.__init__: normal(0, sqrt(2/(fan_in+fan_out))) weights, N(0,1) biases."""
    ks = jax.random.split(key, 8)
    params = {
        # torch Linear keeps weight as (out, in); we store (in, out) so the
        # reference forward is x @ W + b.
        "w1": jax.random.normal(ks[0], (D_in, H), jnp.float32) * np.sqrt(2.0 / (D_in + H)),
        "b1": jax.random.normal(ks[1], (H,), jnp.float32),
        # linear2 / linear3 (and a2 / a3) are unused in forward; kept for fidelity.
        "w2": jax.random.normal(ks[2], (H, H), jnp.float32) * np.sqrt(2.0 / (H + H)),
        "b2": jax.random.normal(ks[3], (H,), jnp.float32),
        "w3": jax.random.normal(ks[4], (H, H), jnp.float32) * np.sqrt(2.0 / (H + H)),
        "b3": jax.random.normal(ks[5], (H,), jnp.float32),
        "w4": jax.random.normal(ks[6], (H, D_out), jnp.float32) * np.sqrt(2.0 / (H + D_out)),
        "b4": jax.random.normal(ks[7], (D_out,), jnp.float32),
        "a1": 0.1,
    }
    return params


def fnn1_ref(x, p):
    a1 = jnp.float32(p["a1"])
    scale = (jnp.float32(1.0) / a1) * a1
    y1 = jnp.tanh(scale * (x @ p["w1"] + p["b1"]))
    return scale * (y1 @ p["w4"] + p["b4"])


if __name__ == "__main__":
    D_in, H, D_out = 4, 32, 4
    key = jax.random.PRNGKey(0)
    kx1, kx2, kp = jax.random.split(key, 3)
    p = init_params(kp, D_in, H, D_out)

    # Small case (batch of 16 padded up to one 128-lane tile).
    x_small = jax.random.normal(kx1, (16, D_in), jnp.float32)
    y_small = jax.block_until_ready(
        fnn1_forward(x_small, p["w1"], p["b1"], p["w4"], p["b4"], p["a1"]))
    np.testing.assert_allclose(np.asarray(y_small),
                               np.asarray(fnn1_ref(x_small, p)),
                               rtol=1e-5, atol=1e-5)

    # Multi-tile case exercising the pipelined grid + tail padding
    # (600 rows, 256-wide tiles -> grid padded to 4 steps for v7x evenness).
    x_big = jax.random.normal(kx2, (600, D_in), jnp.float32)
    y_big = jax.block_until_ready(
        fnn1_forward(x_big, p["w1"], p["b1"], p["w4"], p["b4"], p["a1"], tile_n=256))
    np.testing.assert_allclose(np.asarray(y_big),
                               np.asarray(fnn1_ref(x_big, p)),
                               rtol=1e-5, atol=1e-5)

    print("KERNEL_OK")
</pallas_src>

<mosaic_0001>
module attributes {stable_mosaic.version = 11 : i64} {
  func.func @_fnn1_kernel(%arg0: i32, %arg1: memref<4x128xf32, #tpu.memory_space<vmem>>, %arg2: memref<32x4xf32, #tpu.memory_space<vmem>>, %arg3: memref<32x1xf32, #tpu.memory_space<vmem>>, %arg4: memref<4x32xf32, #tpu.memory_space<vmem>>, %arg5: memref<4x1xf32, #tpu.memory_space<vmem>>, %arg6: memref<4x128xf32, #tpu.memory_space<vmem>>) attributes {dimension_semantics = [#tpu.dimension_semantics<parallel>], iteration_bounds = array<i64: 1>, scalar_prefetch = 0 : i64, scratch_operands = 0 : i64, tpu.core_type = #tpu.core_type<tc>, window_params = [{transform_indices = @transform_0, window_bounds = array<i64: 4, 128>}, {pipeline_mode = #tpu.pipeline_mode<synchronous>, transform_indices = @transform_1, window_bounds = array<i64: 32, 4>}, {pipeline_mode = #tpu.pipeline_mode<synchronous>, transform_indices = @transform_2, window_bounds = array<i64: 32, 1>}, {pipeline_mode = #tpu.pipeline_mode<synchronous>, transform_indices = @transform_3, window_bounds = array<i64: 4, 32>}, {pipeline_mode = #tpu.pipeline_mode<synchronous>, transform_indices = @transform_4, window_bounds = array<i64: 4, 1>}, {transform_indices = @transform_5, window_bounds = array<i64: 4, 128>}]} {
    %c0 = arith.constant 0 : index
    %c0_0 = arith.constant 0 : index
    %0 = vector.load %arg1[%c0, %c0_0] : memref<4x128xf32, #tpu.memory_space<vmem>>, vector<4x128xf32>
    %c0_1 = arith.constant 0 : index
    %c0_2 = arith.constant 0 : index
    %1 = vector.load %arg2[%c0_1, %c0_2] : memref<32x4xf32, #tpu.memory_space<vmem>>, vector<32x4xf32>
    %cst = arith.constant dense<0.000000e+00> : vector<32x128xf32>
    %2 = tpu.matmul %1, %0, %cst {dimension_numbers = #tpu.dot_dimension_numbers<[1], [0], [0], [1], [0, 0, 1, 1], [], []>} : vector<32x4xf32>, vector<4x128xf32>, vector<32x128xf32> -> vector<32x128xf32>
    %c0_3 = arith.constant 0 : index
    %c0_4 = arith.constant 0 : index
    %3 = vector.load %arg3[%c0_3, %c0_4] : memref<32x1xf32, #tpu.memory_space<vmem>>, vector<32x1xf32>
    %4 = vector.broadcast %3 : vector<32x1xf32> to vector<32x128xf32>
    %5 = arith.addf %2, %4 : vector<32x128xf32>
    %6 = math.tanh %5 : vector<32x128xf32>
    %c0_5 = arith.constant 0 : index
    %c0_6 = arith.constant 0 : index
    %7 = vector.load %arg4[%c0_5, %c0_6] : memref<4x32xf32, #tpu.memory_space<vmem>>, vector<4x32xf32>
    %cst_7 = arith.constant dense<0.000000e+00> : vector<4x128xf32>
    %8 = tpu.matmul %7, %6, %cst_7 {dimension_numbers = #tpu.dot_dimension_numbers<[1], [0], [0], [1], [0, 0, 1, 1], [], []>} : vector<4x32xf32>, vector<32x128xf32>, vector<4x128xf32> -> vector<4x128xf32>
    %c0_8 = arith.constant 0 : index
    %c0_9 = arith.constant 0 : index
    %9 = vector.load %arg5[%c0_8, %c0_9] : memref<4x1xf32, #tpu.memory_space<vmem>>, vector<4x1xf32>
    %10 = vector.broadcast %9 : vector<4x1xf32> to vector<4x128xf32>
    %11 = arith.addf %8, %10 : vector<4x128xf32>
    %c0_10 = arith.constant 0 : index
    %c0_11 = arith.constant 0 : index
    %12 = vector.load %arg6[%c0_10, %c0_11] : memref<4x128xf32, #tpu.memory_space<vmem>>, vector<4x128xf32>
    tpu.vector_store %arg6[%c0_10, %c0_11], %11 {strides = array<i32>} : memref<4x128xf32, #tpu.memory_space<vmem>>, vector<4x128xf32>,
    return
  }
  func.func @transform_0(%arg0: i32) -> (i32, i32) {
    %c0_i32 = arith.constant 0 : i32
    %c0_i32_0 = arith.constant 0 : i32
    return %c0_i32, %arg0 : i32, i32
  }
  func.func @transform_1(%arg0: i32) -> (i32, i32) {
    %c0_i32 = arith.constant 0 : i32
    %c0_i32_0 = arith.constant 0 : i32
    %c0_i32_1 = arith.constant 0 : i32
    return %c0_i32, %c0_i32_0 : i32, i32
  }
  func.func @transform_2(%arg0: i32) -> (i32, i32) {
    %c0_i32 = arith.constant 0 : i32
    %c0_i32_0 = arith.constant 0 : i32
    %c0_i32_1 = arith.constant 0 : i32
    return %c0_i32, %c0_i32_0 : i32, i32
  }
  func.func @transform_3(%arg0: i32) -> (i32, i32) {
    %c0_i32 = arith.constant 0 : i32
    %c0_i32_0 = arith.constant 0 : i32
    %c0_i32_1 = arith.constant 0 : i32
    return %c0_i32, %c0_i32_0 : i32, i32
  }
  func.func @transform_4(%arg0: i32) -> (i32, i32) {
    %c0_i32 = arith.constant 0 : i32
    %c0_i32_0 = arith.constant 0 : i32
    %c0_i32_1 = arith.constant 0 : i32
    return %c0_i32, %c0_i32_0 : i32, i32
  }
  func.func @transform_5(%arg0: i32) -> (i32, i32) {
    %c0_i32 = arith.constant 0 : i32
    %c0_i32_0 = arith.constant 0 : i32
    return %c0_i32, %arg0 : i32, i32
  }
}

</mosaic_0001>

<llo_original>
// kernel: fnn1_forward.1
$region0: #{fnn1_forward.1}
  #allocation0 [shape = 'u32[]', space=smem, size = 0x4, offset = 0x4, fixed_abs, tag = 'smem constant byte address 0x4 - core index']
  #allocation1 [shape = 'u32[144,128]{1,0:T(1,128)}', space=vmem, size = 0x12000, scoped, tag = 'internal scratch']
  %s0 = inlined_call_operand.vmem [shape: f32[4,128], index: 0, kind: input, shape index: {}]
  %s1 = inlined_call_operand.vmem [shape: f32[32,4], index: 1, kind: input, shape index: {}]
  %s2 = inlined_call_operand.vmem [shape: f32[32,1], index: 2, kind: input, shape index: {}]
  %s3 = inlined_call_operand.vmem [shape: f32[4,32], index: 3, kind: input, shape index: {}]
  %s4 = inlined_call_operand.vmem [shape: f32[4,1], index: 4, kind: input, shape index: {}]
  %s5 = inlined_call_operand.vmem [shape: f32[4,128], index: 5, kind: output, shape index: {}]
  %s6 = sld [smem:[#allocation0]]
  $region30: #{fnn1_forward.1} parent=0
    _
  %s8 = ssub.s32 1, %s6
  %s9 = scalar_select 0, %s8, %s6
  // Predicated region
  $region2: #{fnn1_forward.1} parent=0 // pred_check
    _
  $region3: #{fnn1_forward.1} parent=0 // pred_check_branch
    %11 = sbr.rel (0) target = $region5
  $region4: #{fnn1_forward.1} parent=0 // pred_region
    _
  $region5: #{fnn1_forward.1} parent=0 // pred_fallthru
    _
  // Predicated region
  $region6: #{fnn1_forward.1} parent=0 // pred_check
    _
  $region7: #{fnn1_forward.1} parent=0 // pred_check_branch
    %13 = sbr.rel (0) target = $region9
  $region8: #{fnn1_forward.1} parent=0 // pred_region
    _
  $region9: #{fnn1_forward.1} parent=0 // pred_fallthru
    _
  // Predicated region
  $region10: #{fnn1_forward.1} parent=0 // pred_check
    _
  $region11: #{fnn1_forward.1} parent=0 // pred_check_branch
    %15 = sbr.rel (0) target = $region13
  $region12: #{fnn1_forward.1} parent=0 // pred_region
    _
  $region13: #{fnn1_forward.1} parent=0 // pred_fallthru
    _
  // Predicated region
  $region14: #{fnn1_forward.1} parent=0 // pred_check
    _
  $region15: #{fnn1_forward.1} parent=0 // pred_check_branch
    %17 = sbr.rel (0) target = $region17
  $region16: #{fnn1_forward.1} parent=0 // pred_region
    _
  $region17: #{fnn1_forward.1} parent=0 // pred_fallthru
    _
  // Predicated region
  $region18: #{fnn1_forward.1} parent=0 // pred_check
    _
  $region19: #{fnn1_forward.1} parent=0 // pred_check_branch
    %19 = sbr.rel (0) target = $region21
  $region20: #{fnn1_forward.1} parent=0 // pred_region
    _
  $region21: #{fnn1_forward.1} parent=0 // pred_fallthru
    _
  %v20 = vld [vmem:[%s0] sm:$0xf]
  %v21 = vld [vmem:[%s1] sm:$0xff]
  %v22 = vld [vmem:[%s1 + $0x8] sm:$0xff]
  %v23 = vld [vmem:[%s1 + $0x10] sm:$0xff]
  %v24 = vld [vmem:[%s1 + $0x18] sm:$0xff]
  %v25 = vld [vmem:[%s2] sm:$0xff]
  %v26 = vld [vmem:[%s2 + $0x8] sm:$0xff]
  %v27 = vld [vmem:[%s2 + $0x10] sm:$0xff]
  %v28 = vld [vmem:[%s2 + $0x18] sm:$0xff]
  %30 = vset.pattern.permute.xlu0 0
  %31 = vperm.xlu0 %30, %v25
  %v32 = vpop.permute.xlu0 %31
  %35 = vset.pattern.permute.xlu0 0
  %36 = vperm.xlu0 %35, %v26
  %v37 = vpop.permute.xlu0 %36
  %40 = vset.pattern.permute.xlu0 0
  %41 = vperm.xlu0 %40, %v27
  %v42 = vpop.permute.xlu0 %41
  %45 = vset.pattern.permute.xlu0 0
  %46 = vperm.xlu0 %45, %v28
  %v47 = vpop.permute.xlu0 %46
  %vm49 = vcmask 31744
  %v51 = vsel %vm49, %v21, 0
  %v54 = vsel %vm49, %v22, 0
  %v57 = vsel %vm49, %v23, 0
  %v60 = vsel %vm49, %v24, 0
  %vm62 = vcmask 1043456
  %v64 = vsel %vm62, %v20, 0
  %66 = vmatprep.subr.mxu0 0.0
  %67 = vmatpush1.msra.mxu0 %v64
  %68 = vmatprep.subr.mxu0 0.0
  %69 = vmatpush1.msra.mxu0 0.0
  %70 = vmatprep.subr.mxu0 0.0
  %71 = vmatpush1.msra.mxu0 0.0
  %72 = vmatprep.subr.mxu0 0.0
  %73 = vmatpush1.msra.mxu0 0.0
  %74 = vmatprep.subr.mxu0 0.0
  %75 = vmatpush1.msra.mxu0 0.0
  %76 = vmatprep.subr.mxu0 0.0
  %77 = vmatpush1.msra.mxu0 0.0
  %78 = vmatprep.subr.mxu0 0.0
  %79 = vmatpush1.msra.mxu0 0.0
  %80 = vmatprep.subr.mxu0 0.0
  %81 = vmatpush1.msra.mxu0 0.0
  %82 = vmatprep.subr.mxu0 0.0
  %83 = vmatpush1.msra.mxu0 0.0
  %84 = vmatprep.subr.mxu0 0.0
  %85 = vmatpush1.msra.mxu0 0.0
  %86 = vmatprep.subr.mxu0 0.0
  %87 = vmatpush1.msra.mxu0 0.0
  %88 = vmatprep.subr.mxu0 0.0
  %89 = vmatpush1.msra.mxu0 0.0
  %90 = vmatprep.subr.mxu0 0.0
  %91 = vmatpush1.msra.mxu0 0.0
  %92 = vmatprep.subr.mxu0 0.0
  %93 = vmatpush1.msra.mxu0 0.0
  %94 = vmatprep.subr.mxu0 0.0
  %95 = vmatpush1.msra.mxu0 0.0
  %96 = vmatprep.subr.mxu0 0.0
  %97 = vmatpush1.msra.mxu0 0.0
  %98 = vmatprep.subr.mxu0 0.0
  %99 = vmatpush1.msra.mxu0 0.0
  %100 = vmatprep.subr.mxu0 0.0
  %101 = vmatpush1.msra.mxu0 0.0
  %102 = vmatprep.subr.mxu0 0.0
  %103 = vmatpush1.msra.mxu0 0.0
  %104 = vmatprep.subr.mxu0 0.0
  %105 = vmatpush1.msra.mxu0 0.0
  %106 = vmatprep.subr.mxu0 0.0
  %107 = vmatpush1.msra.mxu0 0.0
  %108 = vmatprep.subr.mxu0 0.0
  %109 = vmatpush1.msra.mxu0 0.0
  %110 = vmatprep.subr.mxu0 0.0
  %111 = vmatpush1.msra.mxu0 0.0
  %112 = vmatprep.subr.mxu0 0.0
  %113 = vmatpush1.msra.mxu0 0.0
  %114 = vmatprep.subr.mxu0 0.0
  %115 = vmatpush1.msra.mxu0 0.0
  %116 = vmatprep.subr.mxu0 0.0
  %117 = vmatpush1.msra.mxu0 0.0
  %118 = vmatprep.subr.mxu0 0.0
  %119 = vmatpush1.msra.mxu0 0.0
  %120 = vmatprep.subr.mxu0 0.0
  %121 = vmatpush1.msra.mxu0 0.0
  %122 = vmatprep.subr.mxu0 0.0
  %123 = vmatpush1.msra.mxu0 0.0
  %124 = vmatprep.subr.mxu0 0.0
  %125 = vmatpush1.msra.mxu0 0.0
  %126 = vmatprep.subr.mxu0 0.0
  %127 = vmatpush1.msra.mxu0 0.0
  %128 = vmatprep.subr.mxu0 0.0
  %129 = vmatpush1.msra.mxu0 0.0
  %130 = vmatprep.mubr.f32.mxu0 0.0
  %131 = vmatmul.mubr.f32.gmra.mrb[0].mxu0 %v51
  %v132 = vpop.f32.mrb[0].mxu0
  %v133 = vadd.f32 %v32, %v132
  %v134 = vpop.f32.mrb[0].mxu0
  %135 = vmatprep.mubr.f32.mxu0 0.0
  %136 = vmatmul.mubr.f32.gmra.mrb[0].mxu0 %v54
  %v137 = vpop.f32.mrb[0].mxu0
  %v138 = vadd.f32 %v37, %v137
  %v139 = vpop.f32.mrb[0].mxu0
  %140 = vmatprep.mubr.f32.mxu0 0.0
  %141 = vmatmul.mubr.f32.gmra.mrb[0].mxu0 %v57
  %v142 = vpop.f32.mrb[0].mxu0
  %v143 = vadd.f32 %v42, %v142
  %v144 = vpop.f32.mrb[0].mxu0
  %145 = vmatprep.mubr.f32.mxu0 0.0
  %146 = vmatmul.mubr.f32.gmra.mrb[0].mxu0 %v60
  %v147 = vpop.f32.mrb[0].mxu0
  %v148 = vadd.f32 %v47, %v147
  %v149 = vpop.f32.mrb[0].mxu0
  %150 = vdwg.mxu0
  %v151 = vtanh.pop %v133
  %v152 = vtanh.pop %v138
  %v153 = vtanh.pop %v143
  %v154 = vtanh.pop %v148
  %v155 = vld [vmem:[%s3] sm:$0xf]
  %v156 = vld [vmem:[%s4] sm:$0xf]
  %158 = vset.pattern.permute.xlu0 0
  %159 = vperm.xlu0 %158, %v156
  %v160 = vpop.permute.xlu0 %159
  %vm162 = vcmask 261120
  %v164 = vsel %vm162, %v155, 0
  %166 = vmatprep.subr.mxu0 0.0
  %167 = vmatpush1.msra.mxu0 %v151
  %168 = vmatprep.subr.mxu0 0.0
  %169 = vmatpush1.msra.mxu0 %v152
  %170 = vmatprep.subr.mxu0 0.0
  %171 = vmatpush1.msra.mxu0 %v153
  %172 = vmatprep.subr.mxu0 0.0
  %173 = vmatpush1.msra.mxu0 %v154
  %174 = vmatprep.subr.mxu0 0.0
  %175 = vmatpush1.msra.mxu0 0.0
  %176 = vmatprep.subr.mxu0 0.0
  %177 = vmatpush1.msra.mxu0 0.0
  %178 = vmatprep.subr.mxu0 0.0
  %179 = vmatpush1.msra.mxu0 0.0
  %180 = vmatprep.subr.mxu0 0.0
  %181 = vmatpush1.msra.mxu0 0.0
  %182 = vmatprep.subr.mxu0 0.0
  %183 = vmatpush1.msra.mxu0 0.0
  %184 = vmatprep.subr.mxu0 0.0
  %185 = vmatpush1.msra.mxu0 0.0
  %186 = vmatprep.subr.mxu0 0.0
  %187 = vmatpush1.msra.mxu0 0.0
  %188 = vmatprep.subr.mxu0 0.0
  %189 = vmatpush1.msra.mxu0 0.0
  %190 = vmatprep.subr.mxu0 0.0
  %191 = vmatpush1.msra.mxu0 0.0
  %192 = vmatprep.subr.mxu0 0.0
  %193 = vmatpush1.msra.mxu0 0.0
  %194 = vmatprep.subr.mxu0 0.0
  %195 = vmatpush1.msra.mxu0 0.0
  %196 = vmatprep.subr.mxu0 0.0
  %197 = vmatpush1.msra.mxu0 0.0
  %198 = vmatprep.subr.mxu0 0.0
  %199 = vmatpush1.msra.mxu0 0.0
  %200 = vmatprep.subr.mxu0 0.0
  %201 = vmatpush1.msra.mxu0 0.0
  %202 = vmatprep.subr.mxu0 0.0
  %203 = vmatpush1.msra.mxu0 0.0
  %204 = vmatprep.subr.mxu0 0.0
  %205 = vmatpush1.msra.mxu0 0.0
  %206 = vmatprep.subr.mxu0 0.0
  %207 = vmatpush1.msra.mxu0 0.0
  %208 = vmatprep.subr.mxu0 0.0
  %209 = vmatpush1.msra.mxu0 0.0
  %210 = vmatprep.subr.mxu0 0.0
  %211 = vmatpush1.msra.mxu0 0.0
  %212 = vmatprep.subr.mxu0 0.0
  %213 = vmatpush1.msra.mxu0 0.0
  %214 = vmatprep.subr.mxu0 0.0
  %215 = vmatpush1.msra.mxu0 0.0
  %216 = vmatprep.subr.mxu0 0.0
  %217 = vmatpush1.msra.mxu0 0.0
  %218 = vmatprep.subr.mxu0 0.0
  %219 = vmatpush1.msra.mxu0 0.0
  %220 = vmatprep.subr.mxu0 0.0
  %221 = vmatpush1.msra.mxu0 0.0
  %222 = vmatprep.subr.mxu0 0.0
  %223 = vmatpush1.msra.mxu0 0.0
  %224 = vmatprep.subr.mxu0 0.0
  %225 = vmatpush1.msra.mxu0 0.0
  %226 = vmatprep.subr.mxu0 0.0
  %227 = vmatpush1.msra.mxu0 0.0
  %228 = vmatprep.subr.mxu0 0.0
  %229 = vmatpush1.msra.mxu0 0.0
  %230 = vmatprep.mubr.f32.mxu0 0.0
  %231 = vmatmul.mubr.f32.gmra.mrb[0].mxu0 %v164
  %v232 = vpop.f32.mrb[0].mxu0
  %v233 = vadd.f32 %v160, %v232
  %v234 = vpop.f32.mrb[0].mxu0
  %235 = vdwg.mxu0
  %236 = vst [vmem:[%s5] sm:$0xf] %v233
  // Predicated region
  $region22: #{fnn1_forward.1} parent=0 // pred_check
    _
  $region23: #{fnn1_forward.1} parent=0 // pred_check_branch
    %238 = sbr.rel (0) target = $region25
  $region24: #{fnn1_forward.1} parent=0 // pred_region
    _
  $region25: #{fnn1_forward.1} parent=0 // pred_fallthru
    _
  // Predicated region
  $region26: #{fnn1_forward.1} parent=0 // pred_check
    _
  $region27: #{fnn1_forward.1} parent=0 // pred_check_branch
    %240 = sbr.rel (0) target = $region29
  $region28: #{fnn1_forward.1} parent=0 // pred_region
    _
  $region29: #{fnn1_forward.1} parent=0 // pred_fallthru
    _

</llo_original>
